<compile_context>
chip_gen: v6e
topology: v6e:2x2x1
jax: 0.10.0
libtpu: 0.0.40
codegen_flags: <defaults>
</compile_context>

<pallas_src>
import math

import jax
import jax.numpy as jnp
from jax.experimental import pallas as pl
from jax.experimental.pallas import tpu as pltpu


def _layerscale_kernel(x_ref, gamma_ref, o_ref):
    # x_ref: (TILE_R, Dp), gamma_ref: (1, Dp) f32 -> f32 multiply, cast at store.
    o_ref[...] = (x_ref[...].astype(jnp.float32) * gamma_ref[...]).astype(o_ref.dtype)


def _layerscale_residual_kernel(x_ref, res_ref, gamma_ref, o_ref):
    # Fused residual: y = res + x * gamma (all math in f32, cast at store).
    o_ref[...] = (
        res_ref[...].astype(jnp.float32)
        + x_ref[...].astype(jnp.float32) * gamma_ref[...]
    ).astype(o_ref.dtype)


def _sublane_multiple(dtype) -> int:
    # Rows per sublane group: 8 for f32, 16 for bf16/f16, 32 for int8/fp8.
    itemsize = jnp.dtype(dtype).itemsize
    return max(8, 32 // max(itemsize, 1))


def _chip_defaults():
    """(target_block_bytes, vmem_limit_bytes, num_tensorcores) per generation."""
    try:
        kind = jax.devices()[0].device_kind.lower()
    except Exception:  # pragma: no cover - defensive (e.g. AOT on CPU)
        kind = ""
    if "v7" in kind:
        # v7x: 3.2 TB/s HBM but only 64 MiB VMEM/TC; 2 TCs per chip.
        return 8 * 1024 * 1024, 44 * 1024 * 1024, 2
    if "v6" in kind:
        return 4 * 1024 * 1024, 32 * 1024 * 1024, 1
    # v5e and anything unknown: stay under the 16 MiB default scoped-VMEM limit.
    return 2 * 1024 * 1024, 16 * 1024 * 1024, 1


def layer_scale(x: jax.Array, gamma: jax.Array, *,
                residual: jax.Array | None = None,
                inplace: bool = False,
                target_block_bytes: int | None = None,
                vmem_limit_bytes: int | None = None) -> jax.Array:
    """y = x * gamma (+ residual, optionally), gamma broadcast over last axis."""
    orig_shape = x.shape
    dim = orig_shape[-1]
    assert gamma.shape == (dim,), f"gamma shape {gamma.shape} != ({dim},)"
    if residual is not None:
        assert residual.shape == orig_shape, "residual must match x's shape"

    auto_block, auto_vmem, num_tc = _chip_defaults()
    if target_block_bytes is None:
        target_block_bytes = auto_block
    if vmem_limit_bytes is None:
        vmem_limit_bytes = auto_vmem

    # Flatten leading axes into rows; feature dim stays last (lane axis).
    x2d = x.reshape(-1, dim)
    rows = x2d.shape[0]
    res2d = residual.reshape(-1, dim) if residual is not None else None
    gamma_row = gamma.astype(jnp.float32).reshape(1, dim)

    # Lane-dense packing: pack k = lcm(dim, 128) // dim consecutive rows into
    # one row of width k*dim so stores are unmasked full-lane writes.
    dim_p = dim
    k = math.lcm(dim, 128) // dim
    if k > 1 and rows % k == 0:
        x2d = x2d.reshape(rows // k, k * dim)
        if res2d is not None:
            res2d = res2d.reshape(rows // k, k * dim)
        gamma_row = jnp.tile(gamma_row, (1, k))
        dim_p = k * dim
    rows_p = x2d.shape[0]

    # Row-tile size: as many rows as fit ~target_block_bytes, rounded down to a
    # sublane multiple; a block equal to the full row extent is always legal.
    itemsize = jnp.dtype(x.dtype).itemsize
    sub = _sublane_multiple(x.dtype)
    bytes_per_row = max(dim_p * itemsize, 1)
    tile_r = max(sub, (target_block_bytes // bytes_per_row) // sub * sub)
    if tile_r >= rows_p:
        tile_r = rows_p

    # On multi-TensorCore chips make sure the "parallel" grid has >= num_tc
    # blocks so mid-size tensors don't leave a core idle.
    if num_tc > 1 and rows_p >= 2 * sub:
        per_core = pl.cdiv(rows_p, num_tc)
        cap = max(sub, pl.cdiv(per_core, sub) * sub)
        tile_r = min(tile_r, cap)

    grid = (pl.cdiv(rows_p, tile_r),)

    nbytes = rows_p * dim_p * itemsize
    cost = pl.CostEstimate(
        flops=rows_p * dim_p * (2 if residual is not None else 1),
        transcendentals=0,
        bytes_accessed=(3 if residual is not None else 2) * nbytes + dim_p * 4,
    )

    data_spec = pl.BlockSpec((tile_r, dim_p), lambda i: (i, 0))
    gamma_spec = pl.BlockSpec((1, dim_p), lambda i: (0, 0))  # VMEM-resident

    if residual is None:
        kernel = _layerscale_kernel
        operands = (x2d, gamma_row)
        in_specs = [data_spec, gamma_spec]
    else:
        kernel = _layerscale_residual_kernel
        operands = (x2d, res2d, gamma_row)
        in_specs = [data_spec, data_spec, gamma_spec]

    out = pl.pallas_call(
        kernel,
        out_shape=jax.ShapeDtypeStruct((rows_p, dim_p), x.dtype),
        grid_spec=pl.GridSpec(
            grid=grid,
            in_specs=in_specs,
            out_specs=data_spec,
        ),
        compiler_params=pltpu.CompilerParams(
            dimension_semantics=("parallel",),
            vmem_limit_bytes=vmem_limit_bytes,
        ),
        cost_estimate=cost,
        # In-place variant (PyTorch inplace=True): alias x with the output.
        input_output_aliases=({0: 0} if inplace else {}),
    )(*operands)

    return out.reshape(orig_shape)


if __name__ == "__main__":
    key = jax.random.PRNGKey(0)
    init_values = 1e-5

    # 1) Small ViT-like token tensor: batch=2, seq=8, hidden dim=32 (f32).
    B, N, D = 2, 8, 32
    x = jax.random.normal(key, (B, N, D), dtype=jnp.float32)
    gamma = init_values * jnp.ones((D,), dtype=jnp.float32)
    y = jax.block_until_ready(layer_scale(x, gamma))
    assert jnp.allclose(y, x * gamma, atol=1e-6, rtol=1e-6), "mismatch (basic)"

    # 2) Fused residual path: y = res + x * gamma.
    res = jax.random.normal(jax.random.PRNGKey(2), (B, N, D), dtype=jnp.float32)
    yr = jax.block_until_ready(layer_scale(x, gamma, residual=res))
    assert jnp.allclose(yr, res + x * gamma, atol=1e-6, rtol=1e-6), "mismatch (residual)"

    # 3) Larger lane-dense shape (D multiple of 128) with a small block size to
    #    exercise the multi-block, partial-final-tile path.
    x2 = jax.random.normal(jax.random.PRNGKey(1), (4, 577, 256), dtype=jnp.float32)
    g2 = init_values * jnp.ones((256,), dtype=jnp.float32)
    y2 = jax.block_until_ready(layer_scale(x2, g2, target_block_bytes=256 * 1024))
    assert jnp.allclose(y2, x2 * g2, atol=1e-6, rtol=1e-6), "mismatch (large)"

    # 4) bf16 activations, D=192 (not a multiple of 128) -> generalized lane
    #    packing (k=2) + f32 compute with f32 gamma, cast at the store.
    x3 = jax.random.normal(jax.random.PRNGKey(3), (2, 10, 192), dtype=jnp.bfloat16)
    g3 = init_values * jnp.ones((192,), dtype=jnp.float32)
    y3 = jax.block_until_ready(layer_scale(x3, g3))
    ref3 = (x3.astype(jnp.float32) * g3).astype(jnp.bfloat16)
    assert jnp.allclose(y3.astype(jnp.float32), ref3.astype(jnp.float32),
                        atol=1e-9, rtol=1e-2), "mismatch (bf16 packed)"

    print("KERNEL_OK")
</pallas_src>

<mosaic_0001>
module attributes {stable_mosaic.version = 11 : i64} {
  func.func @_layerscale_kernel(%arg0: i32, %arg1: memref<4x128xf32, #tpu.memory_space<vmem>>, %arg2: memref<1x128xf32, #tpu.memory_space<vmem>>, %arg3: memref<4x128xf32, #tpu.memory_space<vmem>>) attributes {dimension_semantics = [#tpu.dimension_semantics<parallel>], iteration_bounds = array<i64: 1>, scalar_prefetch = 0 : i64, scratch_operands = 0 : i64, tpu.core_type = #tpu.core_type<tc>, window_params = [{transform_indices = @transform_0, window_bounds = array<i64: 4, 128>}, {pipeline_mode = #tpu.pipeline_mode<synchronous>, transform_indices = @transform_1, window_bounds = array<i64: 1, 128>}, {transform_indices = @transform_2, window_bounds = array<i64: 4, 128>}]} {
    %c0 = arith.constant 0 : index
    %c0_0 = arith.constant 0 : index
    %0 = vector.load %arg1[%c0, %c0_0] : memref<4x128xf32, #tpu.memory_space<vmem>>, vector<4x128xf32>
    %c0_1 = arith.constant 0 : index
    %c0_2 = arith.constant 0 : index
    %1 = vector.load %arg2[%c0_1, %c0_2] : memref<1x128xf32, #tpu.memory_space<vmem>>, vector<1x128xf32>
    %2 = vector.broadcast %1 : vector<1x128xf32> to vector<4x128xf32>
    %3 = arith.mulf %0, %2 : vector<4x128xf32>
    %c0_3 = arith.constant 0 : index
    %c0_4 = arith.constant 0 : index
    %4 = vector.load %arg3[%c0_3, %c0_4] : memref<4x128xf32, #tpu.memory_space<vmem>>, vector<4x128xf32>
    tpu.vector_store %arg3[%c0_3, %c0_4], %3 {strides = array<i32>} : memref<4x128xf32, #tpu.memory_space<vmem>>, vector<4x128xf32>,
    return
  }
  func.func @transform_0(%arg0: i32) -> (i32, i32) {
    %c0_i32 = arith.constant 0 : i32
    %c0_i32_0 = arith.constant 0 : i32
    return %arg0, %c0_i32 : i32, i32
  }
  func.func @transform_1(%arg0: i32) -> (i32, i32) {
    %c0_i32 = arith.constant 0 : i32
    %c0_i32_0 = arith.constant 0 : i32
    %c0_i32_1 = arith.constant 0 : i32
    return %c0_i32, %c0_i32_0 : i32, i32
  }
  func.func @transform_2(%arg0: i32) -> (i32, i32) {
    %c0_i32 = arith.constant 0 : i32
    %c0_i32_0 = arith.constant 0 : i32
    return %arg0, %c0_i32 : i32, i32
  }
}

</mosaic_0001>

<llo_original>
// kernel: tpu_custom_call.1
$region0: #{tpu_custom_call.1}
  #allocation0 [shape = 'u32[]', space=smem, size = 0x4, offset = 0x4, fixed_abs, tag = 'smem constant byte address 0x4 - core index']
  #allocation1 [shape = 'u32[144,128]{1,0:T(1,128)}', space=vmem, size = 0x12000, scoped, tag = 'internal scratch']
  %s0 = inlined_call_operand.hbm [shape: f32[4,128], index: 0, kind: input, shape index: {}]
  %s1 = inlined_call_operand.vmem [shape: f32[1,128], index: 1, kind: input, shape index: {}]
  %s2 = inlined_call_operand.hbm [shape: f32[4,128], index: 2, kind: output, shape index: {}]
  %s3 = sld [smem:[#allocation0]]
  $region22: #{tpu_custom_call.1} parent=0
    _
  %s5 = ssub.s32 1, %s3
  %s6 = scalar_select 0, %s5, %s3
  $region1: #{tpu_custom_call.1} parent=0
    #allocation2 [shape = 'u8[2048]{0}', space=vmem, size = 0x800, scoped, tag = 'input window, operand 0, single buffered']
    #allocation3 [shape = 's32[1]{0}', space=sflag, size = 0x4, scoped, tag = 'scoped memory for tpu_custom_call.1']
    #allocation4 [shape = 's32[1]{0}', space=sflag, size = 0x4, scoped, tag = 'scoped memory for tpu_custom_call.1']
    #allocation5 [shape = 'u8[2048]{0}', space=vmem, size = 0x800, scoped, tag = 'output window, operand 0, single buffered']
    %7 = vsyncpa [#allocation3], 0
    %8 = vsyncpa [#allocation4], 0
    // Predicated region
    $region2: #{tpu_custom_call.1} parent=1 // pred_check
      _
    $region3: #{tpu_custom_call.1} parent=1 // pred_check_branch
      %10 = sbr.rel (0) target = $region5
    $region4: #{tpu_custom_call.1} parent=1 // pred_region
      %s12 = ssub.s32 64, 64
      %13 = vsyncadd [#allocation3], %s12
      %s15 = sshll.u32 [#allocation2], 4
      %s16 = int_to_ptr.vmem [resolvable:$true] %s15
      %18 = dma.hbm_to_vmem [thread:$0]  %s0, 64, %s16, [#allocation3]
    $region5: #{tpu_custom_call.1} parent=1 // pred_fallthru
      _
    // Predicated region
    $region6: #{tpu_custom_call.1} parent=1 // pred_check
      _
    $region7: #{tpu_custom_call.1} parent=1 // pred_check_branch
      %20 = sbr.rel (0) target = $region9
    $region8: #{tpu_custom_call.1} parent=1 // pred_region
      _
    $region9: #{tpu_custom_call.1} parent=1 // pred_fallthru
      _
    // Predicated region
    $region10: #{tpu_custom_call.1} parent=1 // pred_check
      _
    $region11: #{tpu_custom_call.1} parent=1 // pred_check_branch
      %22 = sbr.rel (0) target = $region13
    $region12: #{tpu_custom_call.1} parent=1 // pred_region
      %23 = dma.done [#allocation3], 64
    $region13: #{tpu_custom_call.1} parent=1 // pred_fallthru
      _
    %v24 = vld [vmem:[#allocation2] sm:$0xf]
    %v25 = vld [vmem:[%s1] sm:$0x1]
    %v27 = vlaneseq
    %v28 = vshrl.u32 %v27, 7
    %v29 = vsub.s32 0, %v28
    %v30 = vrot.slane %v25, %v29
    %v32 = vmul.f32 %v24, %v30
    %33 = vst [vmem:[#allocation5] sm:$0xf] %v32
    // Predicated region
    $region14: #{tpu_custom_call.1} parent=1 // pred_check
      _
    $region15: #{tpu_custom_call.1} parent=1 // pred_check_branch
      %35 = sbr.rel (0) target = $region17
    $region16: #{tpu_custom_call.1} parent=1 // pred_region
      %s37 = ssub.s32 64, 64
      %38 = vsyncadd [#allocation4], %s37
      %s40 = sshll.u32 [#allocation5], 4
      %s41 = int_to_ptr.vmem [resolvable:$true] %s40
      %43 = dma.vmem_to_hbm [thread:$0]  %s41, 64, %s2, [#allocation4]
    $region17: #{tpu_custom_call.1} parent=1 // pred_fallthru
      _
    // Predicated region
    $region18: #{tpu_custom_call.1} parent=1 // pred_check
      _
    $region19: #{tpu_custom_call.1} parent=1 // pred_check_branch
      %45 = sbr.rel (0) target = $region21
    $region20: #{tpu_custom_call.1} parent=1 // pred_region
      %46 = dma.done [#allocation4], 64
    $region21: #{tpu_custom_call.1} parent=1 // pred_fallthru
      _
    %47 = vsyncpa [#allocation3], 1
    %48 = vsyncpa [#allocation4], 1

</llo_original>
